<compile_context>
chip_gen: v7x
topology: tpu7x:2x2x1
jax: 0.10.0
libtpu: 0.0.40
codegen_flags: <defaults>
</compile_context>

<pallas_src>
import functools

import jax
import jax.numpy as jnp
from jax.experimental import pallas as pl
from jax.experimental.pallas import tpu as pltpu

_NEG_BIG = -1e32  # same constant the PyTorch module uses


def _round_up(x, m):
    return (x + m - 1) // m * m


def _cdiv(a, b):
    return (a + b - 1) // b


# ---------------------------------------------------------------------------
# Kernel bodies
# ---------------------------------------------------------------------------

def _masked_logits(x_ref, w_ref, b_ref, mask_ref, mxu_dtype):
    """Linear layer on the MXU (+bias) and pad-position masking; f32 (tm, K)."""
    x = x_ref[...]
    w = w_ref[...]
    if mxu_dtype is not None and x.dtype != mxu_dtype:
        x = x.astype(mxu_dtype)
        w = w.astype(mxu_dtype)
    k = b_ref.shape[-1]                                             # true num_tags
    full = jnp.dot(x, w, preferred_element_type=jnp.float32)        # (tm, K_mm) f32
    logits = full[:, :k] + b_ref[...]                               # (tm, K) f32
    # Single select instead of "+ (1 - mask) * -1e32": identical in f32 because any
    # finite logit + (-1e32) rounds to exactly -1e32.
    return jnp.where(mask_ref[...] > 0.0, logits, jnp.float32(_NEG_BIG))


def _softmax_stats(logits):
    m = jnp.max(logits, axis=-1, keepdims=True)
    e = jnp.exp(logits - m)
    s = jnp.sum(e, axis=-1, keepdims=True)
    return m, e, s


def _ce_partials(logits, m, s, lab_ref, part_ref, n_rows, pad_id):
    """Per-tile (sum of nll, valid count) partials, lane-dense in part_ref."""
    tm = logits.shape[0]
    labels = lab_ref[...]                                            # (tm, 1) int32
    row0 = pl.program_id(0) * tm
    rows = row0 + jax.lax.broadcasted_iota(jnp.int32, (tm, 1), 0)    # (tm, 1)
    in_bounds = rows < n_rows                                        # ragged last tile
    valid = jnp.logical_and(in_bounds, labels != pad_id)             # (tm, 1) bool

    logz = m + jnp.log(s)                                            # (tm, 1)
    tag_ids = jax.lax.broadcasted_iota(jnp.int32, logits.shape, 1)   # (tm, K)
    picked = jnp.sum(jnp.where(tag_ids == labels, logits, 0.0),
                     axis=-1, keepdims=True)                         # (tm, 1)
    # Select (not multiply) so garbage rows of the ragged tile can never inject NaN.
    nll = jnp.where(valid, logz - picked, 0.0)

    tile_sum = jnp.sum(nll)
    tile_cnt = jnp.sum(valid.astype(jnp.float32))
    # Lane 0 = sum of nll, lane 1 = valid count (lane-dense per-tile partial).
    lane = jax.lax.broadcasted_iota(jnp.int32, part_ref.shape, 2)    # (1, 8, 128)
    part_ref[...] = jnp.where(lane == 0, tile_sum,
                              jnp.where(lane == 1, tile_cnt, 0.0)).astype(jnp.float32)


def _infer_kernel(x_ref, w_ref, b_ref, mask_ref, prob_ref, *, mxu_dtype):
    logits = _masked_logits(x_ref, w_ref, b_ref, mask_ref, mxu_dtype)
    _, e, s = _softmax_stats(logits)
    prob_ref[...] = (e / s).astype(prob_ref.dtype)        # exact division (mem-bound)


def _train_kernel(x_ref, w_ref, b_ref, mask_ref, lab_ref, prob_ref, part_ref, *,
                  n_rows, pad_id, mxu_dtype):
    logits = _masked_logits(x_ref, w_ref, b_ref, mask_ref, mxu_dtype)
    m, e, s = _softmax_stats(logits)
    prob_ref[...] = (e / s).astype(prob_ref.dtype)
    _ce_partials(logits, m, s, lab_ref, part_ref, n_rows, pad_id)


def _loss_only_kernel(x_ref, w_ref, b_ref, mask_ref, lab_ref, part_ref, *,
                      n_rows, pad_id, mxu_dtype):
    logits = _masked_logits(x_ref, w_ref, b_ref, mask_ref, mxu_dtype)
    m, _, s = _softmax_stats(logits)
    _ce_partials(logits, m, s, lab_ref, part_ref, n_rows, pad_id)


# ---------------------------------------------------------------------------
# Wrapper
# ---------------------------------------------------------------------------

def _vmem_budget_bytes():
    """Generation-aware VMEM budget: 85% of capacity, 64 MiB fallback (fits v7x)."""
    try:
        cap = int(pltpu.get_tpu_info().vmem_capacity_bytes)
    except Exception:
        cap = 64 << 20
    return max(int(cap * 0.85), 16 << 20)


def _padded_bytes(rows, cols, itemsize):
    """VMEM footprint of a 2-D block after (8, 128) tile padding."""
    return _round_up(max(rows, 1), 8) * _round_up(max(cols, 1), 128) * itemsize


def tagging_fnn_decoder(hiddens, mask, weight, bias, labels=None, *,
                        pad_id=0, tile_rows=1024, return_prob=True,
                        mxu_dtype=None):
    """Pallas forward of TaggingFNNDecoder.

    Returns (prob,) when labels is None, (prob, loss) otherwise, or (loss,) when
    labels is given and return_prob=False (skips the dominant prob HBM write).
    """
    B, T, H = hiddens.shape
    K = weight.shape[1]
    N = B * T

    want_loss = labels is not None
    want_prob = (labels is None) or return_prob

    # Per-token tensors stay in native dtype/layout: reshape is free, no jnp.pad.
    x = hiddens.reshape(N, H)
    m2 = mask.reshape(N, 1).astype(jnp.float32)
    prob_dtype = hiddens.dtype

    # Only the tiny (H, K) weight is padded, to 128 MXU lanes. Bias stays (1, K).
    K_mm = _round_up(K, 128)   # (round to 256 on v6e/v7x only if K ever exceeds 128)
    w = weight.astype(x.dtype)
    if K_mm != K:
        w = jnp.pad(w, ((0, 0), (0, K_mm - K)))
    b = bias.reshape(1, K).astype(jnp.float32)

    x_item = jnp.dtype(x.dtype).itemsize
    prob_item = jnp.dtype(prob_dtype).itemsize
    budget = _vmem_budget_bytes()

    def est(tm):
        e = 2 * _padded_bytes(tm, H, x_item)             # hiddens stream (2 buffers)
        e += 2 * _padded_bytes(H, K_mm, x_item)          # weight (constant map, x2)
        e += 2 * _padded_bytes(1, K, 4)                  # bias
        e += 2 * _padded_bytes(tm, 1, 4)                 # mask
        if want_loss:
            e += 2 * _padded_bytes(tm, 1, 4)             # labels
            e += 2 * _padded_bytes(8, 128, 4)            # loss partials
        if want_prob:
            e += 2 * _padded_bytes(tm, K, prob_item)     # prob
        # in-kernel f32 temporaries (matmul result, logits, exp, iota, ...)
        e += 6 * _padded_bytes(tm, K_mm, 4) + 8 * _padded_bytes(tm, 1, 4)
        return e

    # Big row tiles (kernel is HBM-bandwidth-bound); shrink tm if the estimate would
    # overflow the VMEM budget instead of silently clamping the compiler limit.
    tm = _round_up(min(tile_rows, _round_up(N, 8)), 8)
    while tm > 8 and est(tm) > budget:
        tm = max(8, _round_up(tm // 2, 8))
    n_tiles = _cdiv(N, tm)

    vmem_limit = int(min(budget, max(2 * est(tm), 32 << 20)))
    compiler_params = pltpu.CompilerParams(
        dimension_semantics=("parallel",),               # single row axis, megacore-friendly
        vmem_limit_bytes=vmem_limit)

    row2 = lambda i: (i, 0)
    const2 = lambda i: (0, 0)
    x_spec = pl.BlockSpec((tm, H), row2)
    w_spec = pl.BlockSpec((H, K_mm), const2)
    b_spec = pl.BlockSpec((1, K), const2)
    mask_spec = pl.BlockSpec((tm, 1), row2)
    prob_spec = pl.BlockSpec((tm, K), row2)              # last dim == full K: contiguous rows
    prob_shape = jax.ShapeDtypeStruct((N, K), prob_dtype)

    if labels is None:
        prob_flat = pl.pallas_call(
            functools.partial(_infer_kernel, mxu_dtype=mxu_dtype),
            out_shape=prob_shape,
            grid_spec=pltpu.PrefetchScalarGridSpec(
                num_scalar_prefetch=0, grid=(n_tiles,),
                in_specs=[x_spec, w_spec, b_spec, mask_spec],
                out_specs=prob_spec),
            compiler_params=compiler_params,
        )(x, w, b, m2)
        return (prob_flat.reshape(B, T, K),)

    lab = labels.reshape(N, 1).astype(jnp.int32)
    lab_spec = pl.BlockSpec((tm, 1), row2)
    part_shape = jax.ShapeDtypeStruct((n_tiles, 8, 128), jnp.float32)
    part_spec = pl.BlockSpec((1, 8, 128), lambda i: (i, 0, 0))

    if return_prob:
        prob_flat, part = pl.pallas_call(
            functools.partial(_train_kernel, n_rows=N, pad_id=pad_id,
                              mxu_dtype=mxu_dtype),
            out_shape=(prob_shape, part_shape),
            grid_spec=pltpu.PrefetchScalarGridSpec(
                num_scalar_prefetch=0, grid=(n_tiles,),
                in_specs=[x_spec, w_spec, b_spec, mask_spec, lab_spec],
                out_specs=[prob_spec, part_spec]),
            compiler_params=compiler_params,
        )(x, w, b, m2, lab)
        loss = jnp.sum(part[:, 0, 0]) / jnp.sum(part[:, 0, 1])
        return prob_flat.reshape(B, T, K), loss

    part = pl.pallas_call(
        functools.partial(_loss_only_kernel, n_rows=N, pad_id=pad_id,
                          mxu_dtype=mxu_dtype),
        out_shape=part_shape,
        grid_spec=pltpu.PrefetchScalarGridSpec(
            num_scalar_prefetch=0, grid=(n_tiles,),
            in_specs=[x_spec, w_spec, b_spec, mask_spec, lab_spec],
            out_specs=part_spec),
        compiler_params=compiler_params,
    )(x, w, b, m2, lab)
    loss = jnp.sum(part[:, 0, 0]) / jnp.sum(part[:, 0, 1])
    return (loss,)


# ---------------------------------------------------------------------------
# Plain-JAX reference (matches the PyTorch module) and self-test
# ---------------------------------------------------------------------------

def _reference_forward(hiddens, mask, weight, bias, labels, pad_id):
    K = weight.shape[1]
    logits = hiddens.astype(jnp.float32) @ weight + bias
    logits = logits + (1.0 - mask.astype(jnp.float32))[..., None] * jnp.float32(_NEG_BIG)
    prob = jax.nn.softmax(logits, axis=-1)
    flat = logits.reshape(-1, K)
    lab = labels.reshape(-1)
    logz = jax.scipy.special.logsumexp(flat, axis=-1)
    picked = jnp.take_along_axis(flat, lab[:, None], axis=1)[:, 0]
    nll = logz - picked
    valid = (lab != pad_id).astype(jnp.float32)
    loss = jnp.sum(nll * valid) / jnp.sum(valid)
    return prob, loss


if __name__ == "__main__":
    B, T, H, K = 2, 8, 32, 10          # batch, seq, input_size, num_tags
    PAD_ID = 0

    key = jax.random.PRNGKey(0)
    k_h, k_w, k_b, k_l = jax.random.split(key, 4)

    hiddens = jax.random.normal(k_h, (B, T, H), dtype=jnp.float32)

    # nn.Linear-style deterministic init: U(-1/sqrt(H), 1/sqrt(H)).
    bound = 1.0 / (H ** 0.5)
    weight = jax.random.uniform(k_w, (H, K), minval=-bound, maxval=bound,
                                dtype=jnp.float32)
    bias = jax.random.uniform(k_b, (K,), minval=-bound, maxval=bound,
                              dtype=jnp.float32)

    # Valid lengths 8 and 5; padded positions get mask=0 and label=pad_id.
    lengths = jnp.array([8, 5], dtype=jnp.int32)
    pos = jnp.arange(T, dtype=jnp.int32)[None, :]
    mask = (pos < lengths[:, None]).astype(jnp.float32)                # (B, T)
    labels = jax.random.randint(k_l, (B, T), 1, K, dtype=jnp.int32)
    labels = jnp.where(mask > 0, labels, PAD_ID)                       # (B, T)

    ref_prob, ref_loss = _reference_forward(hiddens, mask, weight, bias,
                                            labels, PAD_ID)

    # Training path (prob + loss).
    prob, loss = tagging_fnn_decoder(hiddens, mask, weight, bias, labels,
                                     pad_id=PAD_ID)
    jax.block_until_ready((prob, loss))
    assert prob.shape == (B, T, K)
    assert jnp.allclose(prob, ref_prob, atol=1e-4), "prob mismatch"
    assert jnp.allclose(loss, ref_loss, rtol=1e-4, atol=1e-4), "loss mismatch"

    # Inference-only path (labels=None) returns just (prob,).
    (prob_only,) = tagging_fnn_decoder(hiddens, mask, weight, bias, None,
                                       pad_id=PAD_ID)
    jax.block_until_ready(prob_only)
    assert jnp.allclose(prob_only, ref_prob, atol=1e-4), "prob (no-label) mismatch"

    # Loss-only training path (skips the prob HBM write entirely).
    (loss_only,) = tagging_fnn_decoder(hiddens, mask, weight, bias, labels,
                                       pad_id=PAD_ID, return_prob=False)
    jax.block_until_ready(loss_only)
    assert jnp.allclose(loss_only, ref_loss, rtol=1e-4, atol=1e-4), "loss-only mismatch"

    # Ragged-tile path: N = 15 rows with an 8-row tile exercises the in-kernel
    # boundary masking (no wrapper-side padding of the per-token arrays).
    B2, T2 = 3, 5
    k_h2, k_l2 = jax.random.split(jax.random.PRNGKey(1), 2)
    hiddens2 = jax.random.normal(k_h2, (B2, T2, H), dtype=jnp.float32)
    lengths2 = jnp.array([5, 3, 4], dtype=jnp.int32)
    pos2 = jnp.arange(T2, dtype=jnp.int32)[None, :]
    mask2 = (pos2 < lengths2[:, None]).astype(jnp.float32)
    labels2 = jax.random.randint(k_l2, (B2, T2), 1, K, dtype=jnp.int32)
    labels2 = jnp.where(mask2 > 0, labels2, PAD_ID)
    prob2, loss2 = tagging_fnn_decoder(hiddens2, mask2, weight, bias, labels2,
                                       pad_id=PAD_ID, tile_rows=8)
    jax.block_until_ready((prob2, loss2))
    ref_prob2, ref_loss2 = _reference_forward(hiddens2, mask2, weight, bias,
                                              labels2, PAD_ID)
    assert jnp.allclose(prob2, ref_prob2, atol=1e-4), "ragged prob mismatch"
    assert jnp.allclose(loss2, ref_loss2, rtol=1e-4, atol=1e-4), "ragged loss mismatch"

    print("KERNEL_OK")
</pallas_src>

<mosaic_0001>
module attributes {stable_mosaic.version = 11 : i64} {
  func.func @_train_kernel(%arg0: i32, %arg1: memref<16x32xf32, #tpu.memory_space<vmem>>, %arg2: memref<32x128xf32, #tpu.memory_space<vmem>>, %arg3: memref<1x10xf32, #tpu.memory_space<vmem>>, %arg4: memref<16x1xf32, #tpu.memory_space<vmem>>, %arg5: memref<16x1xi32, #tpu.memory_space<vmem>>, %arg6: memref<16x10xf32, #tpu.memory_space<vmem>>, %arg7: memref<1x8x128xf32, #tpu.memory_space<vmem>>) attributes {dimension_semantics = [#tpu.dimension_semantics<parallel>], iteration_bounds = array<i64: 1>, scalar_prefetch = 0 : i64, scratch_operands = 0 : i64, tpu.core_type = #tpu.core_type<tc>, window_params = [{transform_indices = @transform_0, window_bounds = array<i64: 16, 32>}, {pipeline_mode = #tpu.pipeline_mode<synchronous>, transform_indices = @transform_1, window_bounds = array<i64: 32, 128>}, {pipeline_mode = #tpu.pipeline_mode<synchronous>, transform_indices = @transform_2, window_bounds = array<i64: 1, 10>}, {transform_indices = @transform_3, window_bounds = array<i64: 16, 1>}, {transform_indices = @transform_4, window_bounds = array<i64: 16, 1>}, {transform_indices = @transform_5, window_bounds = array<i64: 16, 10>}, {transform_indices = @transform_6, window_bounds = array<i64: 1, 8, 128>}]} {
    %c0 = arith.constant 0 : index
    %c0_0 = arith.constant 0 : index
    %0 = vector.load %arg1[%c0, %c0_0] : memref<16x32xf32, #tpu.memory_space<vmem>>, vector<16x32xf32>
    %c0_1 = arith.constant 0 : index
    %c0_2 = arith.constant 0 : index
    %1 = vector.load %arg2[%c0_1, %c0_2] : memref<32x128xf32, #tpu.memory_space<vmem>>, vector<32x128xf32>
    %cst = arith.constant dense<0.000000e+00> : vector<16x128xf32>
    %2 = tpu.matmul %0, %1, %cst {dimension_numbers = #tpu.dot_dimension_numbers<[1], [0], [0], [1], [0, 0, 1, 1], [], []>} : vector<16x32xf32>, vector<32x128xf32>, vector<16x128xf32> -> vector<16x128xf32>
    %3 = vector.extract_strided_slice %2 {offsets = [0, 0], sizes = [16, 10], strides = [1, 1]} : vector<16x128xf32> to vector<16x10xf32>
    %c0_3 = arith.constant 0 : index
    %c0_4 = arith.constant 0 : index
    %4 = vector.load %arg3[%c0_3, %c0_4] : memref<1x10xf32, #tpu.memory_space<vmem>>, vector<1x10xf32>
    %5 = vector.broadcast %4 : vector<1x10xf32> to vector<16x10xf32>
    %6 = arith.addf %3, %5 : vector<16x10xf32>
    %c0_5 = arith.constant 0 : index
    %c0_6 = arith.constant 0 : index
    %7 = vector.load %arg4[%c0_5, %c0_6] : memref<16x1xf32, #tpu.memory_space<vmem>>, vector<16x1xf32>
    %cst_7 = arith.constant 0.000000e+00 : f32
    %8 = vector.broadcast %cst_7 : f32 to vector<16x1xf32>
    %9 = arith.cmpf ogt, %7, %8 : vector<16x1xf32>
    %cst_8 = arith.constant -1.000000e+32 : f32
    %10 = vector.shape_cast %9 : vector<16x1xi1> to vector<16x1xi1>
    %11 = vector.broadcast %10 : vector<16x1xi1> to vector<16x10xi1>
    %12 = vector.broadcast %cst_8 : f32 to vector<16x10xf32>
    %13 = arith.select %11, %6, %12 : vector<16x10xi1>, vector<16x10xf32>
    %cst_9 = arith.constant dense<0xFF800000> : vector<16xf32>
    %14 = vector.multi_reduction <maximumf>, %13, %cst_9 [1] : vector<16x10xf32> to vector<16xf32>
    %15 = vector.shape_cast %14 : vector<16xf32> to vector<16x1xf32>
    %16 = vector.broadcast %15 : vector<16x1xf32> to vector<16x10xf32>
    %17 = arith.subf %13, %16 : vector<16x10xf32>
    %18 = math.exp %17 : vector<16x10xf32>
    %cst_10 = arith.constant dense<0.000000e+00> : vector<16xf32>
    %19 = vector.multi_reduction <add>, %18, %cst_10 [1] : vector<16x10xf32> to vector<16xf32>
    %20 = vector.shape_cast %19 : vector<16xf32> to vector<16x1xf32>
    %21 = vector.broadcast %20 : vector<16x1xf32> to vector<16x10xf32>
    %22 = arith.divf %18, %21 : vector<16x10xf32>
    %c0_11 = arith.constant 0 : index
    %c0_12 = arith.constant 0 : index
    %23 = vector.load %arg6[%c0_11, %c0_12] : memref<16x10xf32, #tpu.memory_space<vmem>>, vector<16x10xf32>
    tpu.vector_store %arg6[%c0_11, %c0_12], %22 {strides = array<i32>} : memref<16x10xf32, #tpu.memory_space<vmem>>, vector<16x10xf32>,
    %c0_13 = arith.constant 0 : index
    %c0_14 = arith.constant 0 : index
    %24 = vector.load %arg5[%c0_13, %c0_14] : memref<16x1xi32, #tpu.memory_space<vmem>>, vector<16x1xi32>
    %c16_i32 = arith.constant 16 : i32
    %25 = arith.muli %arg0, %c16_i32 : i32
    %26 = tpu.iota {dimensions = array<i32: 0>} : vector<16x1xi32>
    %27 = vector.broadcast %25 : i32 to vector<16x1xi32>
    %28 = arith.addi %27, %26 : vector<16x1xi32>
    %c16_i32_15 = arith.constant 16 : i32
    %29 = vector.broadcast %c16_i32_15 : i32 to vector<16x1xi32>
    %30 = arith.cmpi slt, %28, %29 : vector<16x1xi32>
    %c0_i32 = arith.constant 0 : i32
    %31 = vector.broadcast %c0_i32 : i32 to vector<16x1xi32>
    %32 = arith.cmpi ne, %24, %31 : vector<16x1xi32>
    %33 = arith.andi %30, %32 : vector<16x1xi1>
    %34 = math.log %20 : vector<16x1xf32>
    %35 = arith.addf %15, %34 : vector<16x1xf32>
    %36 = tpu.iota {dimensions = array<i32: 1>} : vector<16x10xi32>
    %37 = vector.broadcast %24 : vector<16x1xi32> to vector<16x10xi32>
    %38 = arith.cmpi eq, %36, %37 : vector<16x10xi32>
    %cst_16 = arith.constant 0.000000e+00 : f32
    %39 = vector.broadcast %cst_16 : f32 to vector<16x10xf32>
    %40 = arith.select %38, %13, %39 : vector<16x10xi1>, vector<16x10xf32>
    %cst_17 = arith.constant dense<0.000000e+00> : vector<16xf32>
    %41 = vector.multi_reduction <add>, %40, %cst_17 [1] : vector<16x10xf32> to vector<16xf32>
    %42 = vector.shape_cast %41 : vector<16xf32> to vector<16x1xf32>
    %43 = arith.subf %35, %42 : vector<16x1xf32>
    %cst_18 = arith.constant 0.000000e+00 : f32
    %44 = vector.broadcast %cst_18 : f32 to vector<16x1xf32>
    %45 = arith.select %33, %43, %44 : vector<16x1xi1>, vector<16x1xf32>
    %46 = vector.shape_cast %45 : vector<16x1xf32> to vector<1x16x1xf32>
    %cst_19 = arith.constant dense<0.000000e+00> : vector<1xf32>
    %47 = vector.multi_reduction <add>, %46, %cst_19 [1, 2] : vector<1x16x1xf32> to vector<1xf32>
    %48 = vector.shape_cast %47 : vector<1xf32> to vector<1x1x1xf32>
    %49 = vector.extract %48[0, 0, 0] : f32 from vector<1x1x1xf32>
    %50 = arith.extui %33 : vector<16x1xi1> to vector<16x1xi32>
    %51 = arith.sitofp %50 : vector<16x1xi32> to vector<16x1xf32>
    %52 = vector.shape_cast %51 : vector<16x1xf32> to vector<1x16x1xf32>
    %cst_20 = arith.constant dense<0.000000e+00> : vector<1xf32>
    %53 = vector.multi_reduction <add>, %52, %cst_20 [1, 2] : vector<1x16x1xf32> to vector<1xf32>
    %54 = vector.shape_cast %53 : vector<1xf32> to vector<1x1x1xf32>
    %55 = vector.extract %54[0, 0, 0] : f32 from vector<1x1x1xf32>
    %56 = tpu.iota {dimensions = array<i32: 2>} : vector<1x8x128xi32>
    %c0_i32_21 = arith.constant 0 : i32
    %57 = vector.broadcast %c0_i32_21 : i32 to vector<1x8x128xi32>
    %58 = arith.cmpi eq, %56, %57 : vector<1x8x128xi32>
    %c1_i32 = arith.constant 1 : i32
    %59 = vector.broadcast %c1_i32 : i32 to vector<1x8x128xi32>
    %60 = arith.cmpi eq, %56, %59 : vector<1x8x128xi32>
    %cst_22 = arith.constant 0.000000e+00 : f32
    %61 = vector.broadcast %55 : f32 to vector<1x8x128xf32>
    %62 = vector.broadcast %cst_22 : f32 to vector<1x8x128xf32>
    %63 = arith.select %60, %61, %62 : vector<1x8x128xi1>, vector<1x8x128xf32>
    %64 = vector.broadcast %49 : f32 to vector<1x8x128xf32>
    %65 = arith.select %58, %64, %63 : vector<1x8x128xi1>, vector<1x8x128xf32>
    %c0_23 = arith.constant 0 : index
    %c0_24 = arith.constant 0 : index
    %c0_25 = arith.constant 0 : index
    %66 = vector.load %arg7[%c0_23, %c0_24, %c0_25] : memref<1x8x128xf32, #tpu.memory_space<vmem>>, vector<1x8x128xf32>
    tpu.vector_store %arg7[%c0_23, %c0_24, %c0_25], %65 {strides = array<i32>} : memref<1x8x128xf32, #tpu.memory_space<vmem>>, vector<1x8x128xf32>,
    return
  }
  func.func @transform_0(%arg0: i32) -> (i32, i32) {
    %c0_i32 = arith.constant 0 : i32
    %c0_i32_0 = arith.constant 0 : i32
    return %arg0, %c0_i32 : i32, i32
  }
  func.func @transform_1(%arg0: i32) -> (i32, i32) {
    %c0_i32 = arith.constant 0 : i32
    %c0_i32_0 = arith.constant 0 : i32
    %c0_i32_1 = arith.constant 0 : i32
    return %c0_i32, %c0_i32_0 : i32, i32
  }
  func.func @transform_2(%arg0: i32) -> (i32, i32) {
    %c0_i32 = arith.constant 0 : i32
    %c0_i32_0 = arith.constant 0 : i32
    %c0_i32_1 = arith.constant 0 : i32
    return %c0_i32, %c0_i32_0 : i32, i32
  }
  func.func @transform_3(%arg0: i32) -> (i32, i32) {
    %c0_i32 = arith.constant 0 : i32
    %c0_i32_0 = arith.constant 0 : i32
    return %arg0, %c0_i32 : i32, i32
  }
  func.func @transform_4(%arg0: i32) -> (i32, i32) {
    %c0_i32 = arith.constant 0 : i32
    %c0_i32_0 = arith.constant 0 : i32
    return %arg0, %c0_i32 : i32, i32
  }
  func.func @transform_5(%arg0: i32) -> (i32, i32) {
    %c0_i32 = arith.constant 0 : i32
    %c0_i32_0 = arith.constant 0 : i32
    return %arg0, %c0_i32 : i32, i32
  }
  func.func @transform_6(%arg0: i32) -> (i32, i32, i32) {
    %c0_i32 = arith.constant 0 : i32
    %c0_i32_0 = arith.constant 0 : i32
    %c0_i32_1 = arith.constant 0 : i32
    return %arg0, %c0_i32, %c0_i32_0 : i32, i32, i32
  }
}

</mosaic_0001>

<llo_original>
// kernel: tpu_custom_call.1
$region0: #{tpu_custom_call.1}
  #allocation0 [shape = 'u32[]', space=smem, size = 0x4, offset = 0x4, fixed_abs, tag = 'smem constant byte address 0x4 - core index']
  #allocation1 [shape = 'u32[144,128]{1,0:T(1,128)}', space=vmem, size = 0x12000, scoped, tag = 'internal scratch']
  %s0 = inlined_call_operand.hbm [shape: f32[16,32], index: 0, kind: input, shape index: {}]
  %s1 = inlined_call_operand.vmem [shape: f32[32,128], index: 1, kind: input, shape index: {}]
  %s2 = inlined_call_operand.vmem [shape: f32[1,10], index: 2, kind: input, shape index: {}]
  %s3 = inlined_call_operand.vmem [shape: f32[16,1], index: 3, kind: input, shape index: {}]
  %s4 = inlined_call_operand.vmem [shape: s32[16,1], index: 4, kind: input, shape index: {}]
  %s5 = inlined_call_operand.hbm [shape: f32[16,10], index: 5, kind: output, shape index: {0}]
  %s6 = inlined_call_operand.hbm [shape: f32[1,8,128], index: 6, kind: output, shape index: {1}]
  %7 = xla_tuple %s5, %s6
  %s8 = sld [smem:[#allocation0]]
  $region42: #{tpu_custom_call.1} parent=0
    _
  %s10 = ssub.s32 1, %s8
  %s11 = scalar_select 0, %s10, %s8
  $region1: #{tpu_custom_call.1} parent=0
    #allocation2 [shape = 'u8[8192]{0}', space=vmem, size = 0x2000, scoped, tag = 'input window, operand 0, single buffered']
    #allocation3 [shape = 's32[1]{0}', space=sflag, size = 0x4, scoped, tag = 'scoped memory for tpu_custom_call.1']
    #allocation4 [shape = 's32[1]{0}', space=sflag, size = 0x4, scoped, tag = 'scoped memory for tpu_custom_call.1']
    #allocation5 [shape = 'u8[8192]{0}', space=vmem, size = 0x2000, scoped, tag = 'output window, operand 0, single buffered']
    #allocation6 [shape = 'u8[4096]{0}', space=vmem, size = 0x1000, scoped, tag = 'output window, operand 1, single buffered']
    #allocation7 [shape = 's32[1]{0}', space=sflag, size = 0x4, scoped, tag = 'scoped memory for tpu_custom_call.1']
    %12 = vsyncpa [#allocation3], 0
    %13 = vsyncpa [#allocation4], 0
    %14 = vsyncpa [#allocation7], 0
    // Predicated region
    $region2: #{tpu_custom_call.1} parent=1 // pred_check
      _
    $region3: #{tpu_custom_call.1} parent=1 // pred_check_branch
      %16 = sbr.rel (0) target = $region5
    $region4: #{tpu_custom_call.1} parent=1 // pred_region
      %s18 = ssub.s32 256, 256
      %19 = vsyncadd [#allocation3], %s18
      %s20 = sshll.u32 [#allocation2], 4
      %s21 = int_to_ptr.vmem [resolvable:$true] %s20
      %26 = dma.hbm_to_vmem [thread:$0]  %s0, 256, %s21, [#allocation3], 128, 128, 8
    $region5: #{tpu_custom_call.1} parent=1 // pred_fallthru
      _
    // Predicated region
    $region6: #{tpu_custom_call.1} parent=1 // pred_check
      _
    $region7: #{tpu_custom_call.1} parent=1 // pred_check_branch
      %28 = sbr.rel (0) target = $region9
    $region8: #{tpu_custom_call.1} parent=1 // pred_region
      _
    $region9: #{tpu_custom_call.1} parent=1 // pred_fallthru
      _
    // Predicated region
    $region10: #{tpu_custom_call.1} parent=1 // pred_check
      _
    $region11: #{tpu_custom_call.1} parent=1 // pred_check_branch
      %30 = sbr.rel (0) target = $region13
    $region12: #{tpu_custom_call.1} parent=1 // pred_region
      _
    $region13: #{tpu_custom_call.1} parent=1 // pred_fallthru
      _
    // Predicated region
    $region14: #{tpu_custom_call.1} parent=1 // pred_check
      _
    $region15: #{tpu_custom_call.1} parent=1 // pred_check_branch
      %32 = sbr.rel (0) target = $region17
    $region16: #{tpu_custom_call.1} parent=1 // pred_region
      _
    $region17: #{tpu_custom_call.1} parent=1 // pred_fallthru
      _
    // Predicated region
    $region18: #{tpu_custom_call.1} parent=1 // pred_check
      _
    $region19: #{tpu_custom_call.1} parent=1 // pred_check_branch
      %34 = sbr.rel (0) target = $region21
    $region20: #{tpu_custom_call.1} parent=1 // pred_region
      _
    $region21: #{tpu_custom_call.1} parent=1 // pred_fallthru
      _
    // Predicated region
    $region22: #{tpu_custom_call.1} parent=1 // pred_check
      _
    $region23: #{tpu_custom_call.1} parent=1 // pred_check_branch
      %36 = sbr.rel (0) target = $region25
    $region24: #{tpu_custom_call.1} parent=1 // pred_region
      %37 = dma.done [#allocation3], 256
    $region25: #{tpu_custom_call.1} parent=1 // pred_fallthru
      _
    %v38 = vld [vmem:[#allocation2] sm:$0xff]
    %v39 = vld [vmem:[#allocation2 + $0x8] sm:$0xff]
    %v40 = vld [vmem:[%s1] sm:$0xff]
    %v41 = vld [vmem:[%s1 + $0x8] sm:$0xff]
    %v42 = vld [vmem:[%s1 + $0x10] sm:$0xff]
    %v43 = vld [vmem:[%s1 + $0x18] sm:$0xff]
    %vm44 = vcmask 261120
    %v46 = vsel %vm44, %v38, 0
    %v49 = vsel %vm44, %v39, 0
    %51 = vmatprep.subr.mxu0 0.0
    %52 = vmatpush1.msra.mxu0 %v40
    %53 = vmatprep.subr.mxu0 0.0
    %54 = vmatpush1.msra.mxu0 %v41
    %55 = vmatprep.subr.mxu0 0.0
    %56 = vmatpush1.msra.mxu0 %v42
    %57 = vmatprep.subr.mxu0 0.0
    %58 = vmatpush1.msra.mxu0 %v43
    %59 = vmatprep.subr.mxu0 0.0
    %60 = vmatpush1.msra.mxu0 0.0
    %61 = vmatprep.subr.mxu0 0.0
    %62 = vmatpush1.msra.mxu0 0.0
    %63 = vmatprep.subr.mxu0 0.0
    %64 = vmatpush1.msra.mxu0 0.0
    %65 = vmatprep.subr.mxu0 0.0
    %66 = vmatpush1.msra.mxu0 0.0
    %67 = vmatprep.subr.mxu0 0.0
    %68 = vmatpush1.msra.mxu0 0.0
    %69 = vmatprep.subr.mxu0 0.0
    %70 = vmatpush1.msra.mxu0 0.0
    %71 = vmatprep.subr.mxu0 0.0
    %72 = vmatpush1.msra.mxu0 0.0
    %73 = vmatprep.subr.mxu0 0.0
    %74 = vmatpush1.msra.mxu0 0.0
    %75 = vmatprep.subr.mxu0 0.0
    %76 = vmatpush1.msra.mxu0 0.0
    %77 = vmatprep.subr.mxu0 0.0
    %78 = vmatpush1.msra.mxu0 0.0
    %79 = vmatprep.subr.mxu0 0.0
    %80 = vmatpush1.msra.mxu0 0.0
    %81 = vmatprep.subr.mxu0 0.0
    %82 = vmatpush1.msra.mxu0 0.0
    %83 = vmatprep.subr.mxu0 0.0
    %84 = vmatpush1.msra.mxu0 0.0
    %85 = vmatprep.subr.mxu0 0.0
    %86 = vmatpush1.msra.mxu0 0.0
    %87 = vmatprep.subr.mxu0 0.0
    %88 = vmatpush1.msra.mxu0 0.0
    %89 = vmatprep.subr.mxu0 0.0
    %90 = vmatpush1.msra.mxu0 0.0
    %91 = vmatprep.subr.mxu0 0.0
    %92 = vmatpush1.msra.mxu0 0.0
    %93 = vmatprep.subr.mxu0 0.0
    %94 = vmatpush1.msra.mxu0 0.0
    %95 = vmatprep.subr.mxu0 0.0
    %96 = vmatpush1.msra.mxu0 0.0
    %97 = vmatprep.subr.mxu0 0.0
    %98 = vmatpush1.msra.mxu0 0.0
    %99 = vmatprep.subr.mxu0 0.0
    %100 = vmatpush1.msra.mxu0 0.0
    %101 = vmatprep.subr.mxu0 0.0
    %102 = vmatpush1.msra.mxu0 0.0
    %103 = vmatprep.subr.mxu0 0.0
    %104 = vmatpush1.msra.mxu0 0.0
    %105 = vmatprep.subr.mxu0 0.0
    %106 = vmatpush1.msra.mxu0 0.0
    %107 = vmatprep.subr.mxu0 0.0
    %108 = vmatpush1.msra.mxu0 0.0
    %109 = vmatprep.subr.mxu0 0.0
    %110 = vmatpush1.msra.mxu0 0.0
    %111 = vmatprep.subr.mxu0 0.0
    %112 = vmatpush1.msra.mxu0 0.0
    %113 = vmatprep.subr.mxu0 0.0
    %114 = vmatpush1.msra.mxu0 0.0
    %115 = vmatprep.mubr.f32.mxu0 0.0
    %116 = vmatmul.mubr.f32.gmra.mrb[0].mxu0 %v46
    %v117 = vpop.f32.mrb[0].mxu0
    %v118 = vadd.f32 0.0, %v117
    %v119 = vpop.f32.mrb[0].mxu0
    %120 = vmatprep.mubr.f32.mxu0 0.0
    %121 = vmatmul.mubr.f32.gmra.mrb[0].mxu0 %v49
    %v122 = vpop.f32.mrb[0].mxu0
    %v123 = vadd.f32 0.0, %v122
    %v124 = vpop.f32.mrb[0].mxu0
    %125 = vdwg.mxu0
    %v126 = vld [vmem:[%s2] sm:$0x1]
    %v128 = vlaneseq
    %v129 = vshrl.u32 %v128, 7
    %v130 = vsub.s32 0, %v129
    %v131 = vrot.slane %v126, %v130
    %v133 = vadd.f32 %v118, %v131
    %v134 = vadd.f32 %v123, %v131
    %v135 = vld [vmem:[%s3] sm:$0xff]
    %v136 = vld [vmem:[%s3 + $0x8] sm:$0xff]
    %vm137 = vcmp.gt.f32.partialorder %v135, 0.0
    %vm138 = vcmp.gt.f32.partialorder %v136, 0.0
    %v139 = vsel %vm137, 1, 0
    %v140 = vsel %vm138, 1, 0
    %141 = vset.pattern.permute.xlu0 0
    %142 = vperm.xlu0 %141, %v139
    %v143 = vpop.permute.xlu0 %142
    %144 = vset.pattern.permute.xlu0 0
    %145 = vperm.xlu0 %144, %v140
    %v146 = vpop.permute.xlu0 %145
    %vm147 = vcmp.eq.s32.totalorder %v143, 1
    %vm148 = vcmp.eq.s32.totalorder %v146, 1
    %v149 = vsel %vm147, %v133, -1e+32
    %v150 = vsel %vm148, %v134, -1e+32
    %vm151 = vcmask 80896
    %v152 = vsel %vm151, %v149, -inf
    %153 = vmax.xlane.f32.xlu0 %v152
    %v154 = vpop.xlane.xlu0 %153
    %v155 = vsel %vm151, %v150, -inf
    %156 = vmax.xlane.f32.xlu0 %v155
    %v157 = vpop.xlane.xlu0 %156
    %v158 = vsub.f32 %v149, %v154
    %v159 = vsub.f32 %v150, %v157
    %v160 = vmul.f32 %v158, 1.442695
    %v161 = vpow.pop %v160
    %v162 = vmul.f32 %v159, 1.442695
    %v163 = vpow.pop %v162
    %v164 = vsel %vm151, %v161, 0.0
    %165 = vadd.xlane.f32.xlu0 %v164
    %v166 = vpop.xlane.xlu0 %165
    %v167 = vsel %vm151, %v163, 0.0
    %168 = vadd.xlane.f32.xlu0 %v167
    %v169 = vpop.xlane.xlu0 %168
    %v170 = vrcp.pop %v166
    %v171 = vmul.f32 %v161, %v170
    %v172 = vrcp.pop %v169
    %v173 = vmul.f32 %v163, %v172
    %174 = vst.msk [vmem:[#allocation5] sm:$0xff] %vm151, %v171
    %175 = vst.msk [vmem:[#allocation5 + $0x8] sm:$0xff] %vm151, %v173
    %v176 = vld [vmem:[%s4] sm:$0xff]
    %v177 = vld [vmem:[%s4 + $0x8] sm:$0xff]
    %s178 = smul.u32 0, 16
    %v179 = vlaneseq
    %v180 = vshrl.u32 %v179, 7
    %v181 = vadd.s32 %v180, 8
    %v182 = vstv %s178
    %v183 = vadd.s32 %v182, %v180
    %v184 = vadd.s32 %v182, %v181
    %vm185 = vcmp.lt.s32.totalorder %v183, 16
    %vm186 = vcmp.lt.s32.totalorder %v184, 16
    %vm187 = vcmp.ne.s32.totalorder %v176, 0
    %vm188 = vcmp.ne.s32.totalorder %v177, 0
    %vm189 = vmand %vm185, %vm187
    %vm190 = vmand %vm186, %vm188
    %v191 = vlog2.pop %v166
    %v192 = vmul.f32 %v191, 0.6931472
    %v193 = vlog2.pop %v169
    %v194 = vmul.f32 %v193, 0.6931472
    %v195 = vadd.f32 %v154, %v192
    %v196 = vadd.f32 %v157, %v194
    %v197 = vlaneseq
    %v198 = vand.u32 %v197, 127
    %199 = vset.pattern.permute.xlu0 0
    %200 = vperm.xlu0 %199, %v176
    %v201 = vpop.permute.xlu0 %200
    %202 = vset.pattern.permute.xlu0 0
    %203 = vperm.xlu0 %202, %v177
    %v204 = vpop.permute.xlu0 %203
    %vm205 = vcmp.eq.s32.totalorder %v198, %v201
    %vm206 = vcmp.eq.s32.totalorder %v198, %v204
    %v207 = vsel %vm205, %v149, 0.0
    %v208 = vsel %vm206, %v150, 0.0
    %v209 = vsel %vm151, %v207, 0.0
    %210 = vadd.xlane.f32.xlu0 %v209
    %v211 = vpop.xlane.xlu0 %210
    %v212 = vsel %vm151, %v208, 0.0
    %213 = vadd.xlane.f32.xlu0 %v212
    %v214 = vpop.xlane.xlu0 %213
    %v215 = vsub.f32 %v195, %v211
    %v216 = vsub.f32 %v196, %v214
    %v217 = vsel %vm189, %v215, 0.0
    %v218 = vsel %vm190, %v216, 0.0
    %vm219 = vcmask 7168
    %v220 = vsel %vm219, %v217, 0.0
    %v221 = vsel %vm219, %v218, 0.0
    %v222 = vadd.f32 %v220, %v221
    %223 = vadd.xlane.f32.xlu0 %v222
    %v224 = vpop.xlane.xlu0 %223
    %v225 = vrot.slane %v224, 4
    %v226 = vadd.f32 %v224, %v225
    %v227 = vrot.slane %v226, 2
    %v228 = vadd.f32 %v226, %v227
    %v229 = vrot.slane %v228, 1
    %v230 = vadd.f32 %v228, %v229
    %s231 = vtos %v230
    %v232 = vsel %vm189, 1, 0
    %v233 = vsel %vm190, 1, 0
    %v234 = vcvt.s32.f32 %v232
    %v235 = vcvt.s32.f32 %v233
    %v236 = vsel %vm219, %v234, 0.0
    %v237 = vsel %vm219, %v235, 0.0
    %v238 = vadd.f32 %v236, %v237
    %239 = vadd.xlane.f32.xlu0 %v238
    %v240 = vpop.xlane.xlu0 %239
    %v241 = vrot.slane %v240, 4
    %v242 = vadd.f32 %v240, %v241
    %v243 = vrot.slane %v242, 2
    %v244 = vadd.f32 %v242, %v243
    %v245 = vrot.slane %v244, 1
    %v246 = vadd.f32 %v244, %v245
    %s247 = vtos %v246
    %vm248 = vcmp.eq.s32.totalorder %v198, 0
    %vm249 = vcmp.eq.s32.totalorder %v198, 1
    %v250 = vstv %s247
    %v251 = vsel %vm249, %v250, 0.0
    %v252 = vstv %s231
    %v253 = vsel %vm248, %v252, %v251
    %254 = vst [vmem:[#allocation6] sm:$0xff] %v253
    // Predicated region
    $region26: #{tpu_custom_call.1} parent=1 // pred_check
      _
    $region27: #{tpu_custom_call.1} parent=1 // pred_check_branch
      %256 = sbr.rel (0) target = $region29
    $region28: #{tpu_custom_call.1} parent=1 // pred_region
      %s258 = ssub.s32 256, 256
      %259 = vsyncadd [#allocation4], %s258
      %s260 = sshll.u32 [#allocation5], 4
      %s261 = int_to_ptr.vmem [resolvable:$true] %s260
      %266 = dma.vmem_to_hbm [thread:$0]  %s261, 256, %s5, [#allocation4], 128, 128, 8
    $region29: #{tpu_custom_call.1} parent=1 // pred_fallthru
      _
    // Predicated region
    $region30: #{tpu_custom_call.1} parent=1 // pred_check
      _
    $region31: #{tpu_custom_call.1} parent=1 // pred_check_branch
      %268 = sbr.rel (0) target = $region33
    $region32: #{tpu_custom_call.1} parent=1 // pred_region
      %s270 = ssub.s32 128, 128
      %271 = vsyncadd [#allocation7], %s270
      %s273 = sshll.u32 [#allocation6], 4
      %s274 = int_to_ptr.vmem [resolvable:$true] %s273
      %276 = dma.vmem_to_hbm [thread:$0]  %s274, 128, %s6, [#allocation7]
    $region33: #{tpu_custom_call.1} parent=1 // pred_fallthru
      _
    // Predicated region
    $region34: #{tpu_custom_call.1} parent=1 // pred_check
      _
    $region35: #{tpu_custom_call.1} parent=1 // pred_check_branch
      %278 = sbr.rel (0) target = $region37
    $region36: #{tpu_custom_call.1} parent=1 // pred_region
      %279 = dma.done [#allocation4], 256
    $region37: #{tpu_custom_call.1} parent=1 // pred_fallthru
      _
    // Predicated region
    $region38: #{tpu_custom_call.1} parent=1 // pred_check
      _
    $region39: #{tpu_custom_call.1} parent=1 // pred_check_branch
      %281 = sbr.rel (0) target = $region41
    $region40: #{tpu_custom_call.1} parent=1 // pred_region
      %282 = dma.done [#allocation7], 128
    $region41: #{tpu_custom_call.1} parent=1 // pred_fallthru
      _
    %283 = vsyncpa [#allocation3], 1
    %284 = vsyncpa [#allocation4], 1
    %285 = vsyncpa [#allocation7], 1

</llo_original>
